<compile_context>
chip_gen: v5e
topology: v5e:2x2
jax: 0.10.0
libtpu: 0.0.40
codegen_flags: <defaults>
</compile_context>

<pallas_src>
import functools

import jax
import jax.numpy as jnp
from jax.experimental import pallas as pl
from jax.experimental.pallas import tpu as pltpu

EPS = 1e-6


def _vn_leaky_relu_kernel(x_ref, w_ref, o_ref, *, negative_slope):
    # x_ref / o_ref: (C, 3, tn) block of the native [B, C, 3, N] array (batch squeezed)
    # w_ref:         (C_dir, C) Linear weight (C_dir == C, or 1 for shared nonlinearity)
    w = w_ref[...].astype(jnp.float32)                          # (C_dir, C)

    # Per-component planes, dense (C, tn): channels on sublanes, N on lanes.
    x0 = x_ref[:, 0, :].astype(jnp.float32)
    x1 = x_ref[:, 1, :].astype(jnp.float32)
    x2 = x_ref[:, 2, :].astype(jnp.float32)

    # Direction d = W @ x : one small MXU matmul per 3-component.
    d0 = jnp.dot(w, x0, preferred_element_type=jnp.float32)     # (C_dir, tn)
    d1 = jnp.dot(w, x1, preferred_element_type=jnp.float32)
    d2 = jnp.dot(w, x2, preferred_element_type=jnp.float32)

    # 3-axis reductions as plain VPU adds (broadcast over C when C_dir == 1).
    dot = x0 * d0 + x1 * d1 + x2 * d2                           # (C, tn)
    dsq = d0 * d0 + d1 * d1 + d2 * d2                           # (C_dir, tn)

    # out = x - coeff * d, coeff nonzero only where dot < 0.
    # (pl.reciprocal(..., approx=True) is a further free EUP win if the caller's
    #  tolerance allows the low-order-bit perturbation.)
    inv = pl.reciprocal(dsq + EPS, approx=False)
    coeff = jnp.where(dot < 0.0, (1.0 - negative_slope) * (dot * inv), 0.0)

    o_ref[:, 0, :] = (x0 - coeff * d0).astype(o_ref.dtype)
    o_ref[:, 1, :] = (x1 - coeff * d1).astype(o_ref.dtype)
    o_ref[:, 2, :] = (x2 - coeff * d2).astype(o_ref.dtype)


def _pick_tile_n(N, C, itemsize):
    """Largest lane tile (multiple of 128 dividing N) within a VMEM budget."""
    if N % 128 != 0:
        # Small / ragged N: take the full extent (block dim must equal the array dim).
        # TODO(synk): pad N up to a multiple of 128 for very large non-aligned N.
        return N
    # Double-buffered input + output blocks; the 3-axis is sublane-padded to 8,
    # so each block costs ~C * 8 * tn * itemsize of VMEM -> 4 * 8 * C * tn * itemsize
    # total. Keep that under ~8 MiB so it fits every generation with headroom.
    budget_bytes = 8 * 1024 * 1024
    max_tn = budget_bytes // (32 * C * itemsize)
    tn = min(N, max(128, (max_tn // 128) * 128))
    while N % tn:           # keep every block full (unmasked, lane-dense stores)
        tn -= 128
    return tn


def vn_leaky_relu(x, weight, negative_slope=0.2, *, tile_n=None):
    """x: [B, C, 3, N] (native PyTorch layout); weight: [C_dir, C] from nn.Linear
    (C_dir == C for share_nonlinearity=False, C_dir == 1 for True)."""
    B, C, three, N = x.shape
    assert three == 3
    c_dir, c_in = weight.shape
    assert c_in == C and c_dir in (1, C)

    itemsize = jnp.dtype(x.dtype).itemsize
    tn = tile_n if tile_n is not None else _pick_tile_n(N, C, itemsize)
    assert N % tn == 0, "tile_n must divide N"

    kern = functools.partial(_vn_leaky_relu_kernel,
                             negative_slope=float(negative_slope))
    return pl.pallas_call(
        kern,
        out_shape=jax.ShapeDtypeStruct((B, C, 3, N), x.dtype),
        grid_spec=pltpu.PrefetchScalarGridSpec(
            num_scalar_prefetch=0,
            grid=(B, N // tn),
            in_specs=[
                pl.BlockSpec((None, C, 3, tn), lambda b, j: (b, 0, 0, j)),
                pl.BlockSpec((c_dir, c_in), lambda b, j: (0, 0)),
            ],
            out_specs=pl.BlockSpec((None, C, 3, tn), lambda b, j: (b, 0, 0, j)),
        ),
        compiler_params=pltpu.CompilerParams(
            # Both grid axes are independent -> shard across TensorCores (v7x).
            dimension_semantics=("parallel", "parallel"),
            # Raise the scoped VMEM limit (v5e default is 16 MiB); tiles picked by
            # _pick_tile_n stay well under this on v5e/v6e/v7x.
            vmem_limit_bytes=32 * 1024 * 1024,
        ),
    )(x, weight)


def vn_leaky_relu_ref(x, weight, negative_slope=0.2):
    """Pure-JAX reference matching the PyTorch forward exactly."""
    d = jnp.einsum("bcin,oc->boin", x, weight)
    dot = jnp.sum(x * d, axis=2, keepdims=True)
    mask = (dot >= 0).astype(x.dtype)
    dsq = jnp.sum(d * d, axis=2, keepdims=True)
    return negative_slope * x + (1 - negative_slope) * (
        mask * x + (1 - mask) * (x - dot / (dsq + EPS) * d)
    )


if __name__ == "__main__":
    negative_slope = 0.2
    key = jax.random.PRNGKey(0)
    k1, k2, k3, k4 = jax.random.split(key, 4)

    # Case 1: small shapes (single tile per batch element; tn == N).
    B, C, N = 2, 8, 16
    x = jax.random.normal(k1, (B, C, 3, N), dtype=jnp.float32)
    bound = 1.0 / (C ** 0.5)   # nn.Linear default init range
    w = jax.random.uniform(k2, (C, C), jnp.float32, -bound, bound)
    out = jax.block_until_ready(vn_leaky_relu(x, w, negative_slope))
    ref = vn_leaky_relu_ref(x, w, negative_slope)
    assert out.shape == ref.shape == (B, C, 3, N)
    assert jnp.allclose(out, ref, atol=1e-5, rtol=1e-5), "case 1 mismatch vs reference"

    # Case 2: N tiled on the lane axis (grid = (B, N // 128)) to exercise N-tiling.
    B2, C2, N2 = 2, 16, 256
    x2 = jax.random.normal(k3, (B2, C2, 3, N2), dtype=jnp.float32)
    bound2 = 1.0 / (C2 ** 0.5)
    w2 = jax.random.uniform(k4, (C2, C2), jnp.float32, -bound2, bound2)
    out2 = jax.block_until_ready(vn_leaky_relu(x2, w2, negative_slope, tile_n=128))
    ref2 = vn_leaky_relu_ref(x2, w2, negative_slope)
    assert jnp.allclose(out2, ref2, atol=1e-5, rtol=1e-5), "case 2 mismatch vs reference"

    print("KERNEL_OK")
</pallas_src>

<mosaic_0001>
module attributes {stable_mosaic.version = 11 : i64} {
  func.func @_vn_leaky_relu_kernel(%arg0: i32, %arg1: i32, %arg2: memref<1x8x3x16xf32, #tpu.memory_space<vmem>>, %arg3: memref<8x8xf32, #tpu.memory_space<vmem>>, %arg4: memref<1x8x3x16xf32, #tpu.memory_space<vmem>>) attributes {dimension_semantics = [#tpu.dimension_semantics<parallel>, #tpu.dimension_semantics<parallel>], iteration_bounds = array<i64: 2, 1>, scalar_prefetch = 0 : i64, scratch_operands = 0 : i64, tpu.core_type = #tpu.core_type<tc>, window_params = [{transform_indices = @transform_0, window_bounds = array<i64: 1, 8, 3, 16>}, {pipeline_mode = #tpu.pipeline_mode<synchronous>, transform_indices = @transform_1, window_bounds = array<i64: 8, 8>}, {transform_indices = @transform_2, window_bounds = array<i64: 1, 8, 3, 16>}]} {
    %c0 = arith.constant 0 : index
    %c0_0 = arith.constant 0 : index
    %0 = vector.load %arg3[%c0, %c0_0] : memref<8x8xf32, #tpu.memory_space<vmem>>, vector<8x8xf32>
    %c0_1 = arith.constant 0 : index
    %c0_2 = arith.constant 0 : index
    %c0_3 = arith.constant 0 : index
    %c0_4 = arith.constant 0 : index
    %1 = vector.load %arg2[%c0_1, %c0_2, %c0_3, %c0_4] : memref<1x8x3x16xf32, #tpu.memory_space<vmem>>, vector<1x8x1x16xf32>
    %2 = vector.shape_cast %1 : vector<1x8x1x16xf32> to vector<8x16xf32>
    %c0_5 = arith.constant 0 : index
    %c0_6 = arith.constant 0 : index
    %c1 = arith.constant 1 : index
    %c0_7 = arith.constant 0 : index
    %3 = vector.load %arg2[%c0_5, %c0_6, %c1, %c0_7] : memref<1x8x3x16xf32, #tpu.memory_space<vmem>>, vector<1x8x1x16xf32>
    %4 = vector.shape_cast %3 : vector<1x8x1x16xf32> to vector<8x16xf32>
    %c0_8 = arith.constant 0 : index
    %c0_9 = arith.constant 0 : index
    %c2 = arith.constant 2 : index
    %c0_10 = arith.constant 0 : index
    %5 = vector.load %arg2[%c0_8, %c0_9, %c2, %c0_10] : memref<1x8x3x16xf32, #tpu.memory_space<vmem>>, vector<1x8x1x16xf32>
    %6 = vector.shape_cast %5 : vector<1x8x1x16xf32> to vector<8x16xf32>
    %cst = arith.constant dense<0.000000e+00> : vector<8x16xf32>
    %7 = tpu.matmul %0, %2, %cst {dimension_numbers = #tpu.dot_dimension_numbers<[1], [0], [0], [1], [0, 0, 1, 1], [], []>} : vector<8x8xf32>, vector<8x16xf32>, vector<8x16xf32> -> vector<8x16xf32>
    %cst_11 = arith.constant dense<0.000000e+00> : vector<8x16xf32>
    %8 = tpu.matmul %0, %4, %cst_11 {dimension_numbers = #tpu.dot_dimension_numbers<[1], [0], [0], [1], [0, 0, 1, 1], [], []>} : vector<8x8xf32>, vector<8x16xf32>, vector<8x16xf32> -> vector<8x16xf32>
    %cst_12 = arith.constant dense<0.000000e+00> : vector<8x16xf32>
    %9 = tpu.matmul %0, %6, %cst_12 {dimension_numbers = #tpu.dot_dimension_numbers<[1], [0], [0], [1], [0, 0, 1, 1], [], []>} : vector<8x8xf32>, vector<8x16xf32>, vector<8x16xf32> -> vector<8x16xf32>
    %10 = arith.mulf %2, %7 : vector<8x16xf32>
    %11 = arith.mulf %4, %8 : vector<8x16xf32>
    %12 = arith.addf %10, %11 : vector<8x16xf32>
    %13 = arith.mulf %6, %9 : vector<8x16xf32>
    %14 = arith.addf %12, %13 : vector<8x16xf32>
    %15 = arith.mulf %7, %7 : vector<8x16xf32>
    %16 = arith.mulf %8, %8 : vector<8x16xf32>
    %17 = arith.addf %15, %16 : vector<8x16xf32>
    %18 = arith.mulf %9, %9 : vector<8x16xf32>
    %19 = arith.addf %17, %18 : vector<8x16xf32>
    %cst_13 = arith.constant 9.99999997E-7 : f32
    %20 = vector.broadcast %cst_13 : f32 to vector<8x16xf32>
    %21 = arith.addf %19, %20 : vector<8x16xf32>
    %22 = tpu.reciprocal %21 : vector<8x16xf32> -> vector<8x16xf32>
    %cst_14 = arith.constant 0.000000e+00 : f32
    %23 = vector.broadcast %cst_14 : f32 to vector<8x16xf32>
    %24 = arith.cmpf olt, %14, %23 : vector<8x16xf32>
    %25 = arith.mulf %14, %22 : vector<8x16xf32>
    %cst_15 = arith.constant 8.000000e-01 : f32
    %26 = vector.broadcast %cst_15 : f32 to vector<8x16xf32>
    %27 = arith.mulf %26, %25 : vector<8x16xf32>
    %cst_16 = arith.constant 0.000000e+00 : f32
    %28 = vector.broadcast %cst_16 : f32 to vector<8x16xf32>
    %29 = arith.select %24, %27, %28 : vector<8x16xi1>, vector<8x16xf32>
    %30 = arith.mulf %29, %7 : vector<8x16xf32>
    %31 = arith.subf %2, %30 : vector<8x16xf32>
    %c0_17 = arith.constant 0 : index
    %c0_18 = arith.constant 0 : index
    %c0_19 = arith.constant 0 : index
    %c0_20 = arith.constant 0 : index
    %32 = vector.load %arg4[%c0_17, %c0_18, %c0_19, %c0_20] : memref<1x8x3x16xf32, #tpu.memory_space<vmem>>, vector<1x8x1x16xf32>
    %33 = vector.shape_cast %32 : vector<1x8x1x16xf32> to vector<8x16xf32>
    %34 = vector.shape_cast %31 : vector<8x16xf32> to vector<1x8x1x16xf32>
    tpu.vector_store %arg4[%c0_17, %c0_18, %c0_19, %c0_20], %34 {strides = array<i32>} : memref<1x8x3x16xf32, #tpu.memory_space<vmem>>, vector<1x8x1x16xf32>,
    %35 = arith.mulf %29, %8 : vector<8x16xf32>
    %36 = arith.subf %4, %35 : vector<8x16xf32>
    %c0_21 = arith.constant 0 : index
    %c0_22 = arith.constant 0 : index
    %c1_23 = arith.constant 1 : index
    %c0_24 = arith.constant 0 : index
    %37 = vector.load %arg4[%c0_21, %c0_22, %c1_23, %c0_24] : memref<1x8x3x16xf32, #tpu.memory_space<vmem>>, vector<1x8x1x16xf32>
    %38 = vector.shape_cast %37 : vector<1x8x1x16xf32> to vector<8x16xf32>
    %39 = vector.shape_cast %36 : vector<8x16xf32> to vector<1x8x1x16xf32>
    tpu.vector_store %arg4[%c0_21, %c0_22, %c1_23, %c0_24], %39 {strides = array<i32>} : memref<1x8x3x16xf32, #tpu.memory_space<vmem>>, vector<1x8x1x16xf32>,
    %40 = arith.mulf %29, %9 : vector<8x16xf32>
    %41 = arith.subf %6, %40 : vector<8x16xf32>
    %c0_25 = arith.constant 0 : index
    %c0_26 = arith.constant 0 : index
    %c2_27 = arith.constant 2 : index
    %c0_28 = arith.constant 0 : index
    %42 = vector.load %arg4[%c0_25, %c0_26, %c2_27, %c0_28] : memref<1x8x3x16xf32, #tpu.memory_space<vmem>>, vector<1x8x1x16xf32>
    %43 = vector.shape_cast %42 : vector<1x8x1x16xf32> to vector<8x16xf32>
    %44 = vector.shape_cast %41 : vector<8x16xf32> to vector<1x8x1x16xf32>
    tpu.vector_store %arg4[%c0_25, %c0_26, %c2_27, %c0_28], %44 {strides = array<i32>} : memref<1x8x3x16xf32, #tpu.memory_space<vmem>>, vector<1x8x1x16xf32>,
    return
  }
  func.func @transform_0(%arg0: i32, %arg1: i32) -> (i32, i32, i32, i32) {
    %c0_i32 = arith.constant 0 : i32
    %c0_i32_0 = arith.constant 0 : i32
    %c0_i32_1 = arith.constant 0 : i32
    return %arg0, %c0_i32, %c0_i32_0, %arg1 : i32, i32, i32, i32
  }
  func.func @transform_1(%arg0: i32, %arg1: i32) -> (i32, i32) {
    %c0_i32 = arith.constant 0 : i32
    %c0_i32_0 = arith.constant 0 : i32
    %c0_i32_1 = arith.constant 0 : i32
    return %c0_i32, %c0_i32_0 : i32, i32
  }
  func.func @transform_2(%arg0: i32, %arg1: i32) -> (i32, i32, i32, i32) {
    %c0_i32 = arith.constant 0 : i32
    %c0_i32_0 = arith.constant 0 : i32
    %c0_i32_1 = arith.constant 0 : i32
    return %arg0, %c0_i32, %c0_i32_0, %arg1 : i32, i32, i32, i32
  }
}

</mosaic_0001>

<llo_original>
// kernel: tpu_custom_call.1
$region0: #{tpu_custom_call.1}
  #allocation0 [shape = 'u32[]', space=smem, size = 0x4, offset = 0x4, fixed_abs, tag = 'smem constant byte address 0x4 - core index']
  #allocation1 [shape = 'u32[72,128]{1,0:T(1,128)}', space=vmem, size = 0x9000, scoped, tag = 'internal scratch']
  %s0 = inlined_call_operand.vmem [shape: f32[2,8,3,16], index: 0, kind: input, shape index: {}]
  %s1 = inlined_call_operand.vmem [shape: f32[8,8], index: 1, kind: input, shape index: {}]
  %s2 = inlined_call_operand.vmem [shape: f32[2,8,3,16], index: 2, kind: output, shape index: {}]
  %s3 = sld [smem:[#allocation0]]
  $region41: #{tpu_custom_call.1} parent=0
    _
  %s5 = ssub.s32 1, %s3
  %s6 = scalar_select 0, %s5, %s3
  loop: start=0, step=1, limit=4
  $region2: #{tpu_custom_call.1} parent=0 // loop_pre_header
    _
  $region3: #{tpu_custom_call.1} parent=0 // loop_header
    %s8 = sphi 0, %s12
    %p9 = scmp.ge.s32.totalorder %s8, 4
    %s15 = sphi 0, %s27
    %s16 = sphi 0, %s23
    %s17 = sphi 0, %s15
    %s18 = sphi 0, %s16
    %s19 = sphi 0, %s17
    %s20 = sphi 0, %s18
    %s32 = sphi 0, %s34
    %s35 = sphi 0, %s32
    %s36 = sphi 0, %s35
    %s52 = sphi 0, %s36
    %s56 = sphi 0, %s56
    %s58 = sphi 0, %s56
    %s59 = sphi 0, %s58
    %s73 = sphi 0, %s59
    %s81 = sphi 0, %s83
    %s84 = sphi 0, %s81
    %s85 = sphi 0, %s84
    %s101 = sphi 0, %s85
  $region4: #{tpu_custom_call.1} parent=0 // loop_header_branch
    %11 = sbr.rel (%p9) target = $region8
  $region5: #{tpu_custom_call.1} parent=0 // loop_body
    %s13 = ssub.s32 %s8, 1
    %s14 = ssub.s32 %s8, 2
    %s21 = sadd.s32 1, %s16
    %p22 = scmp.ge.s32.totalorder %s21, 1
    %s23 = scalar_select %p22, 0, %s21
    %s24 = sadd.s32 1, %s15
    %s25 = scalar_select %p22, %s24, %s15
    %p26 = scmp.ge.s32.totalorder %s25, 2
    %s27 = scalar_select %p26, 0, %s25
    %s28 = ssub.s32 %s15, %s27
    %s29 = ssub.s32 %s16, %s23
    %s30 = sor.u32 %s28, %s29
    %p31 = scmp.eq.s32.totalorder %s30, 0
    %s33 = sadd.s32 %s32, 1
    %s34 = scalar_select %p31, %s32, %s33
    %p37 = pneg %p31
    %p38 = scmp.eq.s32.totalorder %s8, 1
    %p39 = por %p37, %p38
    %p40 = scmp.ne.s32.totalorder %s32, %s35
    %p41 = scmp.eq.s32.totalorder %s8, 0
    %p42 = por %p40, %p41
    %p43 = scmp.ne.s32.totalorder %s32, %s35
    %p44 = scmp.eq.s32.totalorder %s13, 1
    %p45 = por %p43, %p44
    %p46 = scmp.ne.s32.totalorder %s35, %s36
    %p47 = scmp.eq.s32.totalorder %s13, 0
    %p48 = por %p46, %p47
    %p49 = scmp.ne.s32.totalorder %s35, %s36
    %p50 = scmp.eq.s32.totalorder %s14, 1
    %p51 = por %p49, %p50
    %p53 = scmp.ne.s32.totalorder %s36, %s52
    %p54 = scmp.eq.s32.totalorder %s14, 0
    %p55 = por %p53, %p54
    %s57 = sadd.s32 %s56, 1
    %p60 = scmp.eq.s32.totalorder %s8, 1
    %p61 = scmp.ne.s32.totalorder %s56, %s58
    %p62 = scmp.eq.s32.totalorder %s8, 0
    %p63 = por %p61, %p62
    %p64 = scmp.ne.s32.totalorder %s56, %s58
    %p65 = scmp.eq.s32.totalorder %s13, 1
    %p66 = por %p64, %p65
    %p67 = scmp.ne.s32.totalorder %s58, %s59
    %p68 = scmp.eq.s32.totalorder %s13, 0
    %p69 = por %p67, %p68
    %p70 = scmp.ne.s32.totalorder %s58, %s59
    %p71 = scmp.eq.s32.totalorder %s14, 1
    %p72 = por %p70, %p71
    %p74 = scmp.ne.s32.totalorder %s59, %s73
    %p75 = scmp.eq.s32.totalorder %s14, 0
    %p76 = por %p74, %p75
    %s77 = ssub.s32 %s15, %s27
    %s78 = ssub.s32 %s16, %s23
    %s79 = sor.u32 %s77, %s78
    %p80 = scmp.eq.s32.totalorder %s79, 0
    %s82 = sadd.s32 %s81, 1
    %s83 = scalar_select %p80, %s81, %s82
    %p86 = pneg %p80
    %p87 = scmp.eq.s32.totalorder %s8, 1
    %p88 = por %p86, %p87
    %p89 = scmp.ne.s32.totalorder %s81, %s84
    %p90 = scmp.eq.s32.totalorder %s8, 0
    %p91 = por %p89, %p90
    %p92 = scmp.ne.s32.totalorder %s81, %s84
    %p93 = scmp.eq.s32.totalorder %s13, 1
    %p94 = por %p92, %p93
    %p95 = scmp.ne.s32.totalorder %s84, %s85
    %p96 = scmp.eq.s32.totalorder %s13, 0
    %p97 = por %p95, %p96
    %p98 = scmp.ne.s32.totalorder %s84, %s85
    %p99 = scmp.eq.s32.totalorder %s14, 1
    %p100 = por %p98, %p99
    %p102 = scmp.ne.s32.totalorder %s85, %s101
    %p103 = scmp.eq.s32.totalorder %s14, 0
    %p104 = por %p102, %p103
    %p105 = scmp.le.s32.totalorder 1, %s8
    %p106 = scmp.lt.s32.totalorder %s8, 3
    %p107 = pnand %p105, %p106
    %p108 = pneg %p107
    // Predicated region
    $region9: #{tpu_custom_call.1} parent=5 // pred_check
      _
    $region10: #{tpu_custom_call.1} parent=5 // pred_check_branch
      %110 = sbr.rel (%p107) target = $region12
    $region11: #{tpu_custom_call.1} parent=5 // pred_region
      %s111 = ssub.s32 %s8, 1
      // Predicated region
      $region13: #{tpu_custom_call.1} parent=11 // pred_check
        %p112 = pneg %p69
      $region14: #{tpu_custom_call.1} parent=11 // pred_check_branch
        %114 = sbr.rel (%p112) target = $region16
      $region15: #{tpu_custom_call.1} parent=11 // pred_region
        _
      $region16: #{tpu_custom_call.1} parent=11 // pred_fallthru
        _
    $region12: #{tpu_custom_call.1} parent=5 // pred_fallthru
      _
    %p115 = scmp.lt.s32.totalorder %s8, 2
    // Predicated region
    $region17: #{tpu_custom_call.1} parent=5 // pred_check
      %p116 = pneg %p115
    $region18: #{tpu_custom_call.1} parent=5 // pred_check_branch
      %118 = sbr.rel (%p116) target = $region20
    $region19: #{tpu_custom_call.1} parent=5 // pred_region
      // Predicated region
      $region21: #{tpu_custom_call.1} parent=19 // pred_check
        %p119 = pneg %p42
      $region22: #{tpu_custom_call.1} parent=19 // pred_check_branch
        %121 = sbr.rel (%p119) target = $region24
      $region23: #{tpu_custom_call.1} parent=19 // pred_region
        %p122 = scmp.lt.s32.totalorder %s15, 1
        %s123 = scalar_select %p122, %s15, 1
        %p124 = scmp.lt.s32.totalorder %s16, 0
        %s125 = scalar_select %p124, %s16, 0
        %s126 = smul.addr %s123, 8
        %s127 = sadd.s32 %s125, %s126
        %s128 = smul.addr %s127, 4
        %s129 = scalar_lea.vmem %s0, %s128
      $region24: #{tpu_custom_call.1} parent=19 // pred_fallthru
        _
    $region20: #{tpu_custom_call.1} parent=5 // pred_fallthru
      _
    %p130 = scmp.le.s32.totalorder 1, %s8
    %p131 = scmp.lt.s32.totalorder %s8, 3
    %p132 = pnand %p130, %p131
    %p133 = pneg %p132
    // Predicated region
    $region25: #{tpu_custom_call.1} parent=5 // pred_check
      _
    $region26: #{tpu_custom_call.1} parent=5 // pred_check_branch
      %135 = sbr.rel (%p132) target = $region28
    $region27: #{tpu_custom_call.1} parent=5 // pred_region
      %s136 = ssub.s32 %s8, 1
      %p137 = scmp.lt.s32.totalorder %s17, 1
      %s138 = scalar_select %p137, %s17, 1
      %p139 = scmp.lt.s32.totalorder %s18, 0
      %s140 = scalar_select %p139, %s18, 0
      %s141 = smul.addr %s138, 8
      %s142 = sadd.s32 %s140, %s141
      %s143 = smul.addr %s142, 4
      %s144 = scalar_lea.vmem %s0, %s143
      %p145 = pneg %p48
      %p146 = pneg %p45
      %p147 = pneg %p69
      %p148 = pneg %p66
      %p149 = pneg %p97
      %p150 = pneg %p94
      %p151 = scmp.lt.s32.totalorder %s17, 1
      %s152 = scalar_select %p151, %s17, 1
      %p153 = scmp.lt.s32.totalorder %s18, 0
      %s154 = scalar_select %p153, %s18, 0
      %s155 = smul.addr %s152, 8
      %s156 = sadd.s32 %s154, %s155
      %s157 = smul.addr %s156, 4
      %s158 = scalar_lea.vmem %s2, %s157
      %p159 = scmp.lt.s32.totalorder %s17, 1
      %s160 = scalar_select %p159, %s17, 1
      %p161 = scmp.lt.s32.totalorder %s18, 0
      %s162 = scalar_select %p161, %s18, 0
      %s163 = smul.addr %s160, 8
      %s164 = sadd.s32 %s162, %s163
      %s165 = smul.addr %s164, 4
      %s166 = scalar_lea.vmem %s0, %s165
      %p167 = scmp.lt.s32.totalorder %s17, 1
      %s168 = scalar_select %p167, %s17, 1
      %p169 = scmp.lt.s32.totalorder %s18, 0
      %s170 = scalar_select %p169, %s18, 0
      %s171 = smul.addr %s168, 8
      %s172 = sadd.s32 %s170, %s171
      %s173 = smul.addr %s172, 4
      %s174 = scalar_lea.vmem %s2, %s173
      %v175 = vld [vmem:[%s1] sm:$0xff]
      %v176 = vld [vmem:[%s166] sm:$0x1]
      %v177 = vld [vmem:[%s166 + $0x4] sm:$0x1]
      %v178 = vld [vmem:[%s166 + $0x8] sm:$0x1]
      %v179 = vld [vmem:[%s166 + $0xc] sm:$0x1]
      %v180 = vld [vmem:[%s166 + $0x10] sm:$0x1]
      %v181 = vld [vmem:[%s166 + $0x14] sm:$0x1]
      %v182 = vld [vmem:[%s166 + $0x18] sm:$0x1]
      %v183 = vld [vmem:[%s166 + $0x1c] sm:$0x1]
      %v184 = vld [vmem:[%s166 + $0x1] sm:$0x1]
      %v185 = vld [vmem:[%s166 + $0x5] sm:$0x1]
      %v186 = vld [vmem:[%s166 + $0x9] sm:$0x1]
      %v187 = vld [vmem:[%s166 + $0xd] sm:$0x1]
      %v188 = vld [vmem:[%s166 + $0x11] sm:$0x1]
      %v189 = vld [vmem:[%s166 + $0x15] sm:$0x1]
      %v190 = vld [vmem:[%s166 + $0x19] sm:$0x1]
      %v191 = vld [vmem:[%s166 + $0x1d] sm:$0x1]
      %v192 = vld [vmem:[%s166 + $0x2] sm:$0x1]
      %v193 = vld [vmem:[%s166 + $0x6] sm:$0x1]
      %v194 = vld [vmem:[%s166 + $0xa] sm:$0x1]
      %v195 = vld [vmem:[%s166 + $0xe] sm:$0x1]
      %v196 = vld [vmem:[%s166 + $0x12] sm:$0x1]
      %v197 = vld [vmem:[%s166 + $0x16] sm:$0x1]
      %v198 = vld [vmem:[%s166 + $0x1a] sm:$0x1]
      %v199 = vld [vmem:[%s166 + $0x1e] sm:$0x1]
      %v208 = vrot.slane %v177, 7
      %vm209 = vcmask 1041409
      %v210 = vsel %vm209, %v208, %v176
      %v211 = vrot.slane %v178, 6
      %vm212 = vcmask 1042434
      %v213 = vsel %vm212, %v211, %v210
      %v214 = vrot.slane %v179, 5
      %vm215 = vcmask 1043459
      %v216 = vsel %vm215, %v214, %v213
      %v217 = vrot.slane %v180, 4
      %vm218 = vcmask 1044484
      %v219 = vsel %vm218, %v217, %v216
      %v220 = vrot.slane %v181, 3
      %vm221 = vcmask 1045509
      %v222 = vsel %vm221, %v220, %v219
      %v223 = vrot.slane %v182, 2
      %vm224 = vcmask 1046534
      %v225 = vsel %vm224, %v223, %v222
      %v226 = vrot.slane %v183, 1
      %vm227 = vcmask 1047559
      %v228 = vsel %vm227, %v226, %v225
      %vm230 = vcmask 64512
      %v232 = vsel %vm230, %v175, 0
      %234 = vmatpush.msra.mxu0 0.0
      %235 = vmatpush.msra.mxu0 0.0
      %236 = vmatpush.msra.mxu0 0.0
      %237 = vmatpush.msra.mxu0 0.0
      %238 = vmatpush.msra.mxu0 0.0
      %239 = vmatpush.msra.mxu0 0.0
      %240 = vmatpush.msra.mxu0 0.0
      %241 = vmatpush.msra.mxu0 0.0
      %242 = vmatpush.msra.mxu0 0.0
      %243 = vmatpush.msra.mxu0 0.0
      %244 = vmatpush.msra.mxu0 0.0
      %245 = vmatpush.msra.mxu0 0.0
      %246 = vmatpush.msra.mxu0 0.0
      %247 = vmatpush.msra.mxu0 0.0
      %248 = vmatpush.msra.mxu0 0.0
      %249 = vmatpush.msra.mxu0 %v228
      %250 = vmatmul.f32.gmra.mxu0 %v232
      %v251 = vpop.f32.mrf.mxu0
      %v252 = vadd.f32 0.0, %v251
      %253 = vdwg.mxu0
      %v262 = vrot.slane %v185, 7
      %v263 = vsel %vm209, %v262, %v184
      %v264 = vrot.slane %v186, 6
      %v265 = vsel %vm212, %v264, %v263
      %v266 = vrot.slane %v187, 5
      %v267 = vsel %vm215, %v266, %v265
      %v268 = vrot.slane %v188, 4
      %v269 = vsel %vm218, %v268, %v267
      %v270 = vrot.slane %v189, 3
      %v271 = vsel %vm221, %v270, %v269
      %v272 = vrot.slane %v190, 2
      %v273 = vsel %vm224, %v272, %v271
      %v274 = vrot.slane %v191, 1
      %v275 = vsel %vm227, %v274, %v273
      %277 = vmatpush.msra.mxu0 0.0
      %278 = vmatpush.msra.mxu0 0.0
      %279 = vmatpush.msra.mxu0 0.0
      %280 = vmatpush.msra.mxu0 0.0
      %281 = vmatpush.msra.mxu0 0.0
      %282 = vmatpush.msra.mxu0 0.0
      %283 = vmatpush.msra.mxu0 0.0
      %284 = vmatpush.msra.mxu0 0.0
      %285 = vmatpush.msra.mxu0 0.0
      %286 = vmatpush.msra.mxu0 0.0
      %287 = vmatpush.msra.mxu0 0.0
      %288 = vmatpush.msra.mxu0 0.0
      %289 = vmatpush.msra.mxu0 0.0
      %290 = vmatpush.msra.mxu0 0.0
      %291 = vmatpush.msra.mxu0 0.0
      %292 = vmatpush.msra.mxu0 %v275
      %293 = vmatmul.f32.gmra.mxu0 %v232
      %v294 = vpop.f32.mrf.mxu0
      %v295 = vadd.f32 0.0, %v294
      %296 = vdwg.mxu0
      %v305 = vrot.slane %v193, 7
      %v306 = vsel %vm209, %v305, %v192
      %v307 = vrot.slane %v194, 6
      %v308 = vsel %vm212, %v307, %v306
      %v309 = vrot.slane %v195, 5
      %v310 = vsel %vm215, %v309, %v308
      %v311 = vrot.slane %v196, 4
      %v312 = vsel %vm218, %v311, %v310
      %v313 = vrot.slane %v197, 3
      %v314 = vsel %vm221, %v313, %v312
      %v315 = vrot.slane %v198, 2
      %v316 = vsel %vm224, %v315, %v314
      %v317 = vrot.slane %v199, 1
      %v318 = vsel %vm227, %v317, %v316
      %320 = vmatpush.msra.mxu0 0.0
      %321 = vmatpush.msra.mxu0 0.0
      %322 = vmatpush.msra.mxu0 0.0
      %323 = vmatpush.msra.mxu0 0.0
      %324 = vmatpush.msra.mxu0 0.0
      %325 = vmatpush.msra.mxu0 0.0
      %326 = vmatpush.msra.mxu0 0.0
      %327 = vmatpush.msra.mxu0 0.0
      %328 = vmatpush.msra.mxu0 0.0
      %329 = vmatpush.msra.mxu0 0.0
      %330 = vmatpush.msra.mxu0 0.0
      %331 = vmatpush.msra.mxu0 0.0
      %332 = vmatpush.msra.mxu0 0.0
      %333 = vmatpush.msra.mxu0 0.0
      %334 = vmatpush.msra.mxu0 0.0
      %335 = vmatpush.msra.mxu0 %v318
      %336 = vmatmul.f32.gmra.mxu0 %v232
      %v337 = vpop.f32.mrf.mxu0
      %v338 = vadd.f32 0.0, %v337
      %339 = vdwg.mxu0
      %v341 = vrot.slane %v252, 1
      %v342 = vrot.slane %v252, 2
      %v343 = vrot.slane %v252, 3
      %v344 = vrot.slane %v252, 4
      %v345 = vrot.slane %v252, 5
      %v346 = vrot.slane %v252, 6
      %v347 = vrot.slane %v252, 7
      %v356 = vmul.f32 %v176, %v252
      %v357 = vmul.f32 %v177, %v341
      %v358 = vmul.f32 %v178, %v342
      %v359 = vmul.f32 %v179, %v343
      %v360 = vmul.f32 %v180, %v344
      %v361 = vmul.f32 %v181, %v345
      %v362 = vmul.f32 %v182, %v346
      %v363 = vmul.f32 %v183, %v347
      %v365 = vrot.slane %v295, 1
      %v366 = vrot.slane %v295, 2
      %v367 = vrot.slane %v295, 3
      %v368 = vrot.slane %v295, 4
      %v369 = vrot.slane %v295, 5
      %v370 = vrot.slane %v295, 6
      %v371 = vrot.slane %v295, 7
      %v380 = vmul.f32 %v184, %v295
      %v381 = vmul.f32 %v185, %v365
      %v382 = vmul.f32 %v186, %v366
      %v383 = vmul.f32 %v187, %v367
      %v384 = vmul.f32 %v188, %v368
      %v385 = vmul.f32 %v189, %v369
      %v386 = vmul.f32 %v190, %v370
      %v387 = vmul.f32 %v191, %v371
      %v388 = vadd.f32 %v356, %v380
      %v389 = vadd.f32 %v357, %v381
      %v390 = vadd.f32 %v358, %v382
      %v391 = vadd.f32 %v359, %v383
      %v392 = vadd.f32 %v360, %v384
      %v393 = vadd.f32 %v361, %v385
      %v394 = vadd.f32 %v362, %v386
      %v395 = vadd.f32 %v363, %v387
      %v397 = vrot.slane %v338, 1
      %v398 = vrot.slane %v338, 2
      %v399 = vrot.slane %v338, 3
      %v400 = vrot.slane %v338, 4
      %v401 = vrot.slane %v338, 5
      %v402 = vrot.slane %v338, 6
      %v403 = vrot.slane %v338, 7
      %v412 = vmul.f32 %v192, %v338
      %v413 = vmul.f32 %v193, %v397
      %v414 = vmul.f32 %v194, %v398
      %v415 = vmul.f32 %v195, %v399
      %v416 = vmul.f32 %v196, %v400
      %v417 = vmul.f32 %v197, %v401
      %v418 = vmul.f32 %v198, %v402
      %v419 = vmul.f32 %v199, %v403
      %v420 = vadd.f32 %v388, %v412
      %v421 = vadd.f32 %v389, %v413
      %v422 = vadd.f32 %v390, %v414
      %v423 = vadd.f32 %v391, %v415
      %v424 = vadd.f32 %v392, %v416
      %v425 = vadd.f32 %v393, %v417
      %v426 = vadd.f32 %v394, %v418
      %v427 = vadd.f32 %v395, %v419
      %v428 = vmul.f32 %v252, %v252
      %v429 = vmul.f32 %v295, %v295
      %v430 = vadd.f32 %v428, %v429
      %v431 = vmul.f32 %v338, %v338
      %v432 = vadd.f32 %v430, %v431
      %v433 = vadd.f32 %v432, 1e-06
      %v434 = vrcp.pop %v433
      %v435 = vmul.f32 %v433, %v434
      %v436 = vsub.f32 1.0, %v435
      %v437 = vmul.f32 %v434, %v436
      %v438 = vadd.f32 %v434, %v437
      %vm439 = vweird.f32 %v433
      %vm440 = vweird.f32 %v434
      %vm441 = vmor %vm439, %vm440
      %v442 = vsel %vm441, %v434, %v438
      %v443 = vand.u32 2147483647, %v433
      %vm444 = vcmp.eq.f32.partialorder %v443, 8.507059e+37
      %v445 = vand.u32 %v433, 2147483648
      %v446 = vor.u32 1.1754944e-38, %v445
      %v447 = vsel %vm444, %v446, %v442
      %vm448 = vcmp.lt.f32.partialorder %v420, 0.0
      %vm449 = vcmp.lt.f32.partialorder %v421, 0.0
      %vm450 = vcmp.lt.f32.partialorder %v422, 0.0
      %vm451 = vcmp.lt.f32.partialorder %v423, 0.0
      %vm452 = vcmp.lt.f32.partialorder %v424, 0.0
      %vm453 = vcmp.lt.f32.partialorder %v425, 0.0
      %vm454 = vcmp.lt.f32.partialorder %v426, 0.0
      %vm455 = vcmp.lt.f32.partialorder %v427, 0.0
      %v457 = vrot.slane %v447, 1
      %v458 = vrot.slane %v447, 2
      %v459 = vrot.slane %v447, 3
      %v460 = vrot.slane %v447, 4
      %v461 = vrot.slane %v447, 5
      %v462 = vrot.slane %v447, 6
      %v463 = vrot.slane %v447, 7
      %v472 = vmul.f32 %v420, %v447
      %v473 = vmul.f32 %v421, %v457
      %v474 = vmul.f32 %v422, %v458
      %v475 = vmul.f32 %v423, %v459
      %v476 = vmul.f32 %v424, %v460
      %v477 = vmul.f32 %v425, %v461
      %v478 = vmul.f32 %v426, %v462
      %v479 = vmul.f32 %v427, %v463
      %v480 = vmul.f32 %v472, 0.8
      %v481 = vmul.f32 %v473, 0.8
      %v482 = vmul.f32 %v474, 0.8
      %v483 = vmul.f32 %v475, 0.8
      %v484 = vmul.f32 %v476, 0.8
      %v485 = vmul.f32 %v477, 0.8
      %v486 = vmul.f32 %v478, 0.8
      %v487 = vmul.f32 %v479, 0.8
      %v488 = vsel %vm448, %v480, 0.0
      %v489 = vsel %vm449, %v481, 0.0
      %v490 = vsel %vm450, %v482, 0.0
      %v491 = vsel %vm451, %v483, 0.0
      %v492 = vsel %vm452, %v484, 0.0
      %v493 = vsel %vm453, %v485, 0.0
      %v494 = vsel %vm454, %v486, 0.0
      %v495 = vsel %vm455, %v487, 0.0
      %v496 = vmul.f32 %v488, %v252
      %v497 = vmul.f32 %v489, %v341
      %v498 = vmul.f32 %v490, %v342
      %v499 = vmul.f32 %v491, %v343
      %v500 = vmul.f32 %v492, %v344
      %v501 = vmul.f32 %v493, %v345
      %v502 = vmul.f32 %v494, %v346
      %v503 = vmul.f32 %v495, %v347
      %v504 = vsub.f32 %v176, %v496
      %v505 = vsub.f32 %v177, %v497
      %v506 = vsub.f32 %v178, %v498
      %v507 = vsub.f32 %v179, %v499
      %v508 = vsub.f32 %v180, %v500
      %v509 = vsub.f32 %v181, %v501
      %v510 = vsub.f32 %v182, %v502
      %v511 = vsub.f32 %v183, %v503
      %vm512 = vcmask 122880
      %513 = vst.msk [vmem:[%s174] sm:$0x1] %vm512, %v504
      %514 = vst.msk [vmem:[%s174 + $0x4] sm:$0x1] %vm512, %v505
      %515 = vst.msk [vmem:[%s174 + $0x8] sm:$0x1] %vm512, %v506
      %516 = vst.msk [vmem:[%s174 + $0xc] sm:$0x1] %vm512, %v507
      %517 = vst.msk [vmem:[%s174 + $0x10] sm:$0x1] %vm512, %v508
      %518 = vst.msk [vmem:[%s174 + $0x14] sm:$0x1] %vm512, %v509
      %519 = vst.msk [vmem:[%s174 + $0x18] sm:$0x1] %vm512, %v510
      %520 = vst.msk [vmem:[%s174 + $0x1c] sm:$0x1] %vm512, %v511
      %v521 = vmul.f32 %v488, %v295
      %v522 = vmul.f32 %v489, %v365
      %v523 = vmul.f32 %v490, %v366
      %v524 = vmul.f32 %v491, %v367
      %v525 = vmul.f32 %v492, %v368
      %v526 = vmul.f32 %v493, %v369
      %v527 = vmul.f32 %v494, %v370
      %v528 = vmul.f32 %v495, %v371
      %v529 = vsub.f32 %v184, %v521
      %v530 = vsub.f32 %v185, %v522
      %v531 = vsub.f32 %v186, %v523
      %v532 = vsub.f32 %v187, %v524
      %v533 = vsub.f32 %v188, %v525
      %v534 = vsub.f32 %v189, %v526
      %v535 = vsub.f32 %v190, %v527
      %v536 = vsub.f32 %v191, %v528
      %537 = vst.msk [vmem:[%s174 + $0x1] sm:$0x1] %vm512, %v529
      %538 = vst.msk [vmem:[%s174 + $0x5] sm:$0x1] %vm512, %v530
      %539 = vst.msk [vmem:[%s174 + $0x9] sm:$0x1] %vm512, %v531
      %540 = vst.msk [vmem:[%s174 + $0xd] sm:$0x1] %vm512, %v532
      %541 = vst.msk [vmem:[%s174 + $0x11] sm:$0x1] %vm512, %v533
      %542 = vst.msk [vmem:[%s174 + $0x15] sm:$0x1] %vm512, %v534
      %543 = vst.msk [vmem:[%s174 + $0x19] sm:$0x1] %vm512, %v535
      %544 = vst.msk [vmem:[%s174 + $0x1d] sm:$0x1] %vm512, %v536
      %v545 = vmul.f32 %v488, %v338
      %v546 = vmul.f32 %v489, %v397
      %v547 = vmul.f32 %v490, %v398
      %v548 = vmul.f32 %v491, %v399
      %v549 = vmul.f32 %v492, %v400
      %v550 = vmul.f32 %v493, %v401
      %v551 = vmul.f32 %v494, %v402
      %v552 = vmul.f32 %v495, %v403
      %v553 = vsub.f32 %v192, %v545
      %v554 = vsub.f32 %v193, %v546
      %v555 = vsub.f32 %v194, %v547
      %v556 = vsub.f32 %v195, %v548
      %v557 = vsub.f32 %v196, %v549
      %v558 = vsub.f32 %v197, %v550
      %v559 = vsub.f32 %v198, %v551
      %v560 = vsub.f32 %v199, %v552
      %561 = vst.msk [vmem:[%s174 + $0x2] sm:$0x1] %vm512, %v553
      %562 = vst.msk [vmem:[%s174 + $0x6] sm:$0x1] %vm512, %v554
      %563 = vst.msk [vmem:[%s174 + $0xa] sm:$0x1] %vm512, %v555
      %564 = vst.msk [vmem:[%s174 + $0xe] sm:$0x1] %vm512, %v556
      %565 = vst.msk [vmem:[%s174 + $0x12] sm:$0x1] %vm512, %v557
      %566 = vst.msk [vmem:[%s174 + $0x16] sm:$0x1] %vm512, %v558
      %567 = vst.msk [vmem:[%s174 + $0x1a] sm:$0x1] %vm512, %v559
      %568 = vst.msk [vmem:[%s174 + $0x1e] sm:$0x1] %vm512, %v560
      %p569 = scmp.lt.s32.totalorder %s17, 1
      %s570 = scalar_select %p569, %s17, 1
      %p571 = scmp.lt.s32.totalorder %s18, 0
      %s572 = scalar_select %p571, %s18, 0
      %s573 = smul.addr %s570, 8
      %s574 = sadd.s32 %s572, %s573
      %s575 = smul.addr %s574, 4
      %s576 = scalar_lea.vmem %s2, %s575
      // Predicated region
      $region29: #{tpu_custom_call.1} parent=27 // pred_check
        %p577 = pneg %p94
      $region30: #{tpu_custom_call.1} parent=27 // pred_check_branch
        %579 = sbr.rel (%p577) target = $region32
      $region31: #{tpu_custom_call.1} parent=27 // pred_region
        _
      $region32: #{tpu_custom_call.1} parent=27 // pred_fallthru
        _
    $region28: #{tpu_custom_call.1} parent=5 // pred_fallthru
      _
    %p580 = scmp.le.s32.totalorder 2, %s8
    // Predicated region
    $region33: #{tpu_custom_call.1} parent=5 // pred_check
      %p581 = pneg %p580
    $region34: #{tpu_custom_call.1} parent=5 // pred_check_branch
      %583 = sbr.rel (%p581) target = $region36
    $region35: #{tpu_custom_call.1} parent=5 // pred_region
      %s584 = ssub.s32 %s8, 2
      // Predicated region
      $region37: #{tpu_custom_call.1} parent=35 // pred_check
        %p585 = pneg %p100
      $region38: #{tpu_custom_call.1} parent=35 // pred_check_branch
        %587 = sbr.rel (%p585) target = $region40
      $region39: #{tpu_custom_call.1} parent=35 // pred_region
        %p588 = scmp.lt.s32.totalorder %s19, 1
        %s589 = scalar_select %p588, %s19, 1
        %p590 = scmp.lt.s32.totalorder %s20, 0
        %s591 = scalar_select %p590, %s20, 0
        %s592 = smul.addr %s589, 8
        %s593 = sadd.s32 %s591, %s592
        %s594 = smul.addr %s593, 4
        %s595 = scalar_lea.vmem %s2, %s594
      $region40: #{tpu_custom_call.1} parent=35 // pred_fallthru
        _
    $region36: #{tpu_custom_call.1} parent=5 // pred_fallthru
      _
  $region6: #{tpu_custom_call.1} parent=0 // loop_footer
    %s12 = sadd.s32 1, %s8
  $region7: #{tpu_custom_call.1} parent=0 // loop_footer_branch
    %7 = sbr.rel target = $region3
  $region8: #{tpu_custom_call.1} parent=0 // loop_exit
    _

</llo_original>
